<compile_context>
chip_gen: v5e
topology: v5e:2x2
jax: 0.10.0
libtpu: 0.0.40
codegen_flags: <defaults>
</compile_context>

<pallas_src>
import functools
import math

import jax
import jax.numpy as jnp
from jax.experimental import pallas as pl
from jax.experimental.pallas import tpu as pltpu

D_K = D_V = 7      # from the PyTorch source
D_PAD = 8          # head dim padded to sublane/lane-friendly 8


def sdpa_kernel(q_ref, k_ref, v_ref, ctx_ref, attn_ref, *, scale):
    # q/k/v: [G, S, D_PAD] with G = batch * heads (all groups processed at once)
    q = q_ref[...]
    k = k_ref[...]
    v = v_ref[...]

    # scores[g, q, k] = sum_d q[g, q, d] * k[g, k, d]   (no transpose materialized)
    scores = jax.lax.dot_general(
        q, k,
        dimension_numbers=(((2,), (2,)), ((0,), (0,))),
        preferred_element_type=jnp.float32) * scale          # [G, S, S]

    # Softmax over the last axis (matches nn.Softmax(dim=-1)).
    m = jnp.max(scores, axis=-1, keepdims=True)
    e = jnp.exp(scores - m)
    attn = e / jnp.sum(e, axis=-1, keepdims=True)            # [G, S, S]
    attn_ref[...] = attn

    # context[g, q, d] = sum_k attn[g, q, k] * v[g, k, d]
    ctx_ref[...] = jax.lax.dot_general(
        attn, v,
        dimension_numbers=(((2,), (1,)), ((0,), (0,))),
        preferred_element_type=jnp.float32)                  # [G, S, D_PAD]


@jax.jit
def scaled_dot_product_attention(Q, K, V):
    """Q: [B, H, Lq, d_k], K: [B, H, Lk, d_k], V: [B, H, Lk, d_v]."""
    B, H, Lq, dk = Q.shape
    Lk = K.shape[2]
    dv = V.shape[3]
    G = B * H
    scale = 1.0 / math.sqrt(dk)   # np.sqrt(d_k) in the reference, d_k = 7

    def pad_last(x, p):
        return jnp.pad(x, ((0, 0), (0, 0), (0, 0), (0, p))) if p else x

    # Zero-pad head dim to 8 (exact: zeros add nothing to the dot products),
    # fold batch*heads into one leading group dim.
    qg = pad_last(Q, D_PAD - dk).reshape(G, Lq, D_PAD).astype(jnp.float32)
    kg = pad_last(K, D_PAD - dk).reshape(G, Lk, D_PAD).astype(jnp.float32)
    vg = pad_last(V, D_PAD - dv).reshape(G, Lk, D_PAD).astype(jnp.float32)

    kernel = functools.partial(sdpa_kernel, scale=scale)

    ctx, attn = pl.pallas_call(
        kernel,
        out_shape=(
            jax.ShapeDtypeStruct((G, Lq, D_PAD), jnp.float32),
            jax.ShapeDtypeStruct((G, Lq, Lk), jnp.float32),
        ),
        grid_spec=pltpu.PrefetchScalarGridSpec(
            num_scalar_prefetch=0,
            grid=(1,),  # single fat program: whole problem lives in VMEM
            in_specs=[
                pl.BlockSpec((G, Lq, D_PAD), lambda i: (0, 0, 0)),
                pl.BlockSpec((G, Lk, D_PAD), lambda i: (0, 0, 0)),
                pl.BlockSpec((G, Lk, D_PAD), lambda i: (0, 0, 0)),
            ],
            out_specs=[
                pl.BlockSpec((G, Lq, D_PAD), lambda i: (0, 0, 0)),
                pl.BlockSpec((G, Lq, Lk), lambda i: (0, 0, 0)),
            ],
        ),
        compiler_params=pltpu.CompilerParams(
            dimension_semantics=("arbitrary",)),
    )(qg, kg, vg)

    context = ctx.reshape(B, H, Lq, D_PAD)[..., :dv]   # drop the padded column
    attention = attn.reshape(B, H, Lq, Lk)
    return context, attention


if __name__ == "__main__":
    key = jax.random.PRNGKey(0)
    kq, kk, kv = jax.random.split(key, 3)

    B, H, Lq, Lk = 2, 4, 8, 8
    Q = jax.random.normal(kq, (B, H, Lq, D_K), jnp.float32)
    K = jax.random.normal(kk, (B, H, Lk, D_K), jnp.float32)
    V = jax.random.normal(kv, (B, H, Lk, D_V), jnp.float32)

    context, attn = scaled_dot_product_attention(Q, K, V)
    jax.block_until_ready((context, attn))

    assert context.shape == (B, H, Lq, D_V)
    assert attn.shape == (B, H, Lq, Lk)

    # Pure-JAX reference (same default matmul precision) for a sanity check.
    scores_ref = jnp.einsum("bhqd,bhkd->bhqk", Q, K) / math.sqrt(D_K)
    attn_ref = jax.nn.softmax(scores_ref, axis=-1)
    ctx_ref = jnp.einsum("bhqk,bhkd->bhqd", attn_ref, V)
    assert jnp.allclose(attn, attn_ref, atol=1e-2, rtol=1e-2)
    assert jnp.allclose(context, ctx_ref, atol=1e-2, rtol=1e-2)

    print("KERNEL_OK")
</pallas_src>

<mosaic_0001>
module attributes {stable_mosaic.version = 11 : i64} {
  func.func @sdpa_kernel(%arg0: i32, %arg1: memref<8x8x8xf32, #tpu.memory_space<vmem>>, %arg2: memref<8x8x8xf32, #tpu.memory_space<vmem>>, %arg3: memref<8x8x8xf32, #tpu.memory_space<vmem>>, %arg4: memref<8x8x8xf32, #tpu.memory_space<vmem>>, %arg5: memref<8x8x8xf32, #tpu.memory_space<vmem>>) attributes {dimension_semantics = [#tpu.dimension_semantics<arbitrary>], iteration_bounds = array<i64: 1>, scalar_prefetch = 0 : i64, scratch_operands = 0 : i64, tpu.core_type = #tpu.core_type<tc>, window_params = [{pipeline_mode = #tpu.pipeline_mode<synchronous>, transform_indices = @transform_0, window_bounds = array<i64: 8, 8, 8>}, {pipeline_mode = #tpu.pipeline_mode<synchronous>, transform_indices = @transform_1, window_bounds = array<i64: 8, 8, 8>}, {pipeline_mode = #tpu.pipeline_mode<synchronous>, transform_indices = @transform_2, window_bounds = array<i64: 8, 8, 8>}, {pipeline_mode = #tpu.pipeline_mode<synchronous>, transform_indices = @transform_3, window_bounds = array<i64: 8, 8, 8>}, {pipeline_mode = #tpu.pipeline_mode<synchronous>, transform_indices = @transform_4, window_bounds = array<i64: 8, 8, 8>}]} {
    %c0 = arith.constant 0 : index
    %c0_0 = arith.constant 0 : index
    %c0_1 = arith.constant 0 : index
    %0 = vector.load %arg1[%c0, %c0_0, %c0_1] : memref<8x8x8xf32, #tpu.memory_space<vmem>>, vector<8x8x8xf32>
    %c0_2 = arith.constant 0 : index
    %c0_3 = arith.constant 0 : index
    %c0_4 = arith.constant 0 : index
    %1 = vector.load %arg2[%c0_2, %c0_3, %c0_4] : memref<8x8x8xf32, #tpu.memory_space<vmem>>, vector<8x8x8xf32>
    %c0_5 = arith.constant 0 : index
    %c0_6 = arith.constant 0 : index
    %c0_7 = arith.constant 0 : index
    %2 = vector.load %arg3[%c0_5, %c0_6, %c0_7] : memref<8x8x8xf32, #tpu.memory_space<vmem>>, vector<8x8x8xf32>
    %cst = arith.constant dense<0.000000e+00> : vector<8x8x8xf32>
    %3 = tpu.matmul %0, %1, %cst {dimension_numbers = #tpu.dot_dimension_numbers<[2], [2], [1], [1], [0, 0, 0, 1, 1, 1], [0], [0]>} : vector<8x8x8xf32>, vector<8x8x8xf32>, vector<8x8x8xf32> -> vector<8x8x8xf32>
    %cst_8 = arith.constant 0.377964467 : f32
    %4 = vector.broadcast %cst_8 : f32 to vector<8x8x8xf32>
    %5 = arith.mulf %3, %4 : vector<8x8x8xf32>
    %cst_9 = arith.constant dense<0xFF800000> : vector<8x8xf32>
    %6 = vector.multi_reduction <maximumf>, %5, %cst_9 [2] : vector<8x8x8xf32> to vector<8x8xf32>
    %7 = vector.shape_cast %6 : vector<8x8xf32> to vector<8x8x1xf32>
    %8 = vector.broadcast %7 : vector<8x8x1xf32> to vector<8x8x8xf32>
    %9 = arith.subf %5, %8 : vector<8x8x8xf32>
    %10 = math.exp %9 : vector<8x8x8xf32>
    %cst_10 = arith.constant dense<0.000000e+00> : vector<8x8xf32>
    %11 = vector.multi_reduction <add>, %10, %cst_10 [2] : vector<8x8x8xf32> to vector<8x8xf32>
    %12 = vector.shape_cast %11 : vector<8x8xf32> to vector<8x8x1xf32>
    %13 = vector.broadcast %12 : vector<8x8x1xf32> to vector<8x8x8xf32>
    %14 = arith.divf %10, %13 : vector<8x8x8xf32>
    %c0_11 = arith.constant 0 : index
    %c0_12 = arith.constant 0 : index
    %c0_13 = arith.constant 0 : index
    %15 = vector.load %arg5[%c0_11, %c0_12, %c0_13] : memref<8x8x8xf32, #tpu.memory_space<vmem>>, vector<8x8x8xf32>
    tpu.vector_store %arg5[%c0_11, %c0_12, %c0_13], %14 {strides = array<i32>} : memref<8x8x8xf32, #tpu.memory_space<vmem>>, vector<8x8x8xf32>,
    %cst_14 = arith.constant dense<0.000000e+00> : vector<8x8x8xf32>
    %16 = tpu.matmul %14, %2, %cst_14 {dimension_numbers = #tpu.dot_dimension_numbers<[2], [1], [1], [2], [0, 0, 0, 1, 1, 2], [0], [0]>} : vector<8x8x8xf32>, vector<8x8x8xf32>, vector<8x8x8xf32> -> vector<8x8x8xf32>
    %c0_15 = arith.constant 0 : index
    %c0_16 = arith.constant 0 : index
    %c0_17 = arith.constant 0 : index
    %17 = vector.load %arg4[%c0_15, %c0_16, %c0_17] : memref<8x8x8xf32, #tpu.memory_space<vmem>>, vector<8x8x8xf32>
    tpu.vector_store %arg4[%c0_15, %c0_16, %c0_17], %16 {strides = array<i32>} : memref<8x8x8xf32, #tpu.memory_space<vmem>>, vector<8x8x8xf32>,
    return
  }
  func.func @transform_0(%arg0: i32) -> (i32, i32, i32) {
    %c0_i32 = arith.constant 0 : i32
    %c0_i32_0 = arith.constant 0 : i32
    %c0_i32_1 = arith.constant 0 : i32
    %c0_i32_2 = arith.constant 0 : i32
    return %c0_i32, %c0_i32_0, %c0_i32_1 : i32, i32, i32
  }
  func.func @transform_1(%arg0: i32) -> (i32, i32, i32) {
    %c0_i32 = arith.constant 0 : i32
    %c0_i32_0 = arith.constant 0 : i32
    %c0_i32_1 = arith.constant 0 : i32
    %c0_i32_2 = arith.constant 0 : i32
    return %c0_i32, %c0_i32_0, %c0_i32_1 : i32, i32, i32
  }
  func.func @transform_2(%arg0: i32) -> (i32, i32, i32) {
    %c0_i32 = arith.constant 0 : i32
    %c0_i32_0 = arith.constant 0 : i32
    %c0_i32_1 = arith.constant 0 : i32
    %c0_i32_2 = arith.constant 0 : i32
    return %c0_i32, %c0_i32_0, %c0_i32_1 : i32, i32, i32
  }
  func.func @transform_3(%arg0: i32) -> (i32, i32, i32) {
    %c0_i32 = arith.constant 0 : i32
    %c0_i32_0 = arith.constant 0 : i32
    %c0_i32_1 = arith.constant 0 : i32
    %c0_i32_2 = arith.constant 0 : i32
    return %c0_i32, %c0_i32_0, %c0_i32_1 : i32, i32, i32
  }
  func.func @transform_4(%arg0: i32) -> (i32, i32, i32) {
    %c0_i32 = arith.constant 0 : i32
    %c0_i32_0 = arith.constant 0 : i32
    %c0_i32_1 = arith.constant 0 : i32
    %c0_i32_2 = arith.constant 0 : i32
    return %c0_i32, %c0_i32_0, %c0_i32_1 : i32, i32, i32
  }
}

</mosaic_0001>

<llo_original>
// kernel: scaled_dot_product_attention.1
$region0: #{scaled_dot_product_attention.1}
  #allocation0 [shape = 'u32[]', space=smem, size = 0x4, offset = 0x4, fixed_abs, tag = 'smem constant byte address 0x4 - core index']
  #allocation1 [shape = 'u32[72,128]{1,0:T(1,128)}', space=vmem, size = 0x9000, scoped, tag = 'internal scratch']
  %s0 = inlined_call_operand.vmem [shape: f32[8,8,8], index: 0, kind: input, shape index: {}]
  %s1 = inlined_call_operand.vmem [shape: f32[8,8,8], index: 1, kind: input, shape index: {}]
  %s2 = inlined_call_operand.vmem [shape: f32[8,8,8], index: 2, kind: input, shape index: {}]
  %s3 = inlined_call_operand.vmem [shape: f32[8,8,8], index: 3, kind: output, shape index: {0}]
  %s4 = inlined_call_operand.hbm [shape: f32[8,8,8], index: 4, kind: output, shape index: {1}]
  %5 = xla_tuple %s3, %s4
  %s6 = sld [smem:[#allocation0]]
  $region30: #{scaled_dot_product_attention.1} parent=0
    _
  %s8 = ssub.s32 1, %s6
  %s9 = scalar_select 0, %s8, %s6
  $region1: #{scaled_dot_product_attention.1} parent=0
    #allocation2 [shape = 'u8[32768]{0}', space=vmem, size = 0x8000, scoped, tag = 'output window, operand 1, single buffered']
    #allocation3 [shape = 's32[1]{0}', space=sflag, size = 0x4, scoped, tag = 'scoped memory for scaled_dot_product_attention.1']
    %10 = vsyncpa [#allocation3], 0
    // Predicated region
    $region2: #{scaled_dot_product_attention.1} parent=1 // pred_check
      _
    $region3: #{scaled_dot_product_attention.1} parent=1 // pred_check_branch
      %12 = sbr.rel (0) target = $region5
    $region4: #{scaled_dot_product_attention.1} parent=1 // pred_region
      _
    $region5: #{scaled_dot_product_attention.1} parent=1 // pred_fallthru
      _
    // Predicated region
    $region6: #{scaled_dot_product_attention.1} parent=1 // pred_check
      _
    $region7: #{scaled_dot_product_attention.1} parent=1 // pred_check_branch
      %14 = sbr.rel (0) target = $region9
    $region8: #{scaled_dot_product_attention.1} parent=1 // pred_region
      _
    $region9: #{scaled_dot_product_attention.1} parent=1 // pred_fallthru
      _
    // Predicated region
    $region10: #{scaled_dot_product_attention.1} parent=1 // pred_check
      _
    $region11: #{scaled_dot_product_attention.1} parent=1 // pred_check_branch
      %16 = sbr.rel (0) target = $region13
    $region12: #{scaled_dot_product_attention.1} parent=1 // pred_region
      _
    $region13: #{scaled_dot_product_attention.1} parent=1 // pred_fallthru
      _
    %v17 = vld [vmem:[%s0] sm:$0xff]
    %v18 = vld [vmem:[%s0 + $0x8] sm:$0xff]
    %v19 = vld [vmem:[%s0 + $0x10] sm:$0xff]
    %v20 = vld [vmem:[%s0 + $0x18] sm:$0xff]
    %v21 = vld [vmem:[%s0 + $0x20] sm:$0xff]
    %v22 = vld [vmem:[%s0 + $0x28] sm:$0xff]
    %v23 = vld [vmem:[%s0 + $0x30] sm:$0xff]
    %v24 = vld [vmem:[%s0 + $0x38] sm:$0xff]
    %v25 = vld [vmem:[%s1] sm:$0xff]
    %v26 = vld [vmem:[%s1 + $0x8] sm:$0xff]
    %v27 = vld [vmem:[%s1 + $0x10] sm:$0xff]
    %v28 = vld [vmem:[%s1 + $0x18] sm:$0xff]
    %v29 = vld [vmem:[%s1 + $0x20] sm:$0xff]
    %v30 = vld [vmem:[%s1 + $0x28] sm:$0xff]
    %v31 = vld [vmem:[%s1 + $0x30] sm:$0xff]
    %v32 = vld [vmem:[%s1 + $0x38] sm:$0xff]
    %v33 = vld [vmem:[%s2] sm:$0xff]
    %v34 = vld [vmem:[%s2 + $0x8] sm:$0xff]
    %v35 = vld [vmem:[%s2 + $0x10] sm:$0xff]
    %v36 = vld [vmem:[%s2 + $0x18] sm:$0xff]
    %v37 = vld [vmem:[%s2 + $0x20] sm:$0xff]
    %v38 = vld [vmem:[%s2 + $0x28] sm:$0xff]
    %v39 = vld [vmem:[%s2 + $0x30] sm:$0xff]
    %v40 = vld [vmem:[%s2 + $0x38] sm:$0xff]
    %vm41 = vcmask 64512
    %v43 = vsel %vm41, %v17, 0
    %v46 = vsel %vm41, %v25, 0
    %48 = vmatpush.xpose.msra.mxu0 0.0
    %49 = vmatpush.xpose.msra.mxu0 0.0
    %50 = vmatpush.xpose.msra.mxu0 0.0
    %51 = vmatpush.xpose.msra.mxu0 0.0
    %52 = vmatpush.xpose.msra.mxu0 0.0
    %53 = vmatpush.xpose.msra.mxu0 0.0
    %54 = vmatpush.xpose.msra.mxu0 0.0
    %55 = vmatpush.xpose.msra.mxu0 0.0
    %56 = vmatpush.xpose.msra.mxu0 0.0
    %57 = vmatpush.xpose.msra.mxu0 0.0
    %58 = vmatpush.xpose.msra.mxu0 0.0
    %59 = vmatpush.xpose.msra.mxu0 0.0
    %60 = vmatpush.xpose.msra.mxu0 0.0
    %61 = vmatpush.xpose.msra.mxu0 0.0
    %62 = vmatpush.xpose.msra.mxu0 0.0
    %63 = vmatpush.xpose.msra.mxu0 %v46
    %64 = vmatmul.f32.gmra.mxu0 %v43
    %v65 = vpop.f32.mrf.mxu0
    %v66 = vadd.f32 0.0, %v65
    %67 = vdwg.mxu0
    %v69 = vsel %vm41, %v18, 0
    %v72 = vsel %vm41, %v26, 0
    %74 = vmatpush.xpose.msra.mxu0 0.0
    %75 = vmatpush.xpose.msra.mxu0 0.0
    %76 = vmatpush.xpose.msra.mxu0 0.0
    %77 = vmatpush.xpose.msra.mxu0 0.0
    %78 = vmatpush.xpose.msra.mxu0 0.0
    %79 = vmatpush.xpose.msra.mxu0 0.0
    %80 = vmatpush.xpose.msra.mxu0 0.0
    %81 = vmatpush.xpose.msra.mxu0 0.0
    %82 = vmatpush.xpose.msra.mxu0 0.0
    %83 = vmatpush.xpose.msra.mxu0 0.0
    %84 = vmatpush.xpose.msra.mxu0 0.0
    %85 = vmatpush.xpose.msra.mxu0 0.0
    %86 = vmatpush.xpose.msra.mxu0 0.0
    %87 = vmatpush.xpose.msra.mxu0 0.0
    %88 = vmatpush.xpose.msra.mxu0 0.0
    %89 = vmatpush.xpose.msra.mxu0 %v72
    %90 = vmatmul.f32.gmra.mxu0 %v69
    %v91 = vpop.f32.mrf.mxu0
    %v92 = vadd.f32 0.0, %v91
    %93 = vdwg.mxu0
    %v95 = vsel %vm41, %v19, 0
    %v98 = vsel %vm41, %v27, 0
    %100 = vmatpush.xpose.msra.mxu0 0.0
    %101 = vmatpush.xpose.msra.mxu0 0.0
    %102 = vmatpush.xpose.msra.mxu0 0.0
    %103 = vmatpush.xpose.msra.mxu0 0.0
    %104 = vmatpush.xpose.msra.mxu0 0.0
    %105 = vmatpush.xpose.msra.mxu0 0.0
    %106 = vmatpush.xpose.msra.mxu0 0.0
    %107 = vmatpush.xpose.msra.mxu0 0.0
    %108 = vmatpush.xpose.msra.mxu0 0.0
    %109 = vmatpush.xpose.msra.mxu0 0.0
    %110 = vmatpush.xpose.msra.mxu0 0.0
    %111 = vmatpush.xpose.msra.mxu0 0.0
    %112 = vmatpush.xpose.msra.mxu0 0.0
    %113 = vmatpush.xpose.msra.mxu0 0.0
    %114 = vmatpush.xpose.msra.mxu0 0.0
    %115 = vmatpush.xpose.msra.mxu0 %v98
    %116 = vmatmul.f32.gmra.mxu0 %v95
    %v117 = vpop.f32.mrf.mxu0
    %v118 = vadd.f32 0.0, %v117
    %119 = vdwg.mxu0
    %v121 = vsel %vm41, %v20, 0
    %v124 = vsel %vm41, %v28, 0
    %126 = vmatpush.xpose.msra.mxu0 0.0
    %127 = vmatpush.xpose.msra.mxu0 0.0
    %128 = vmatpush.xpose.msra.mxu0 0.0
    %129 = vmatpush.xpose.msra.mxu0 0.0
    %130 = vmatpush.xpose.msra.mxu0 0.0
    %131 = vmatpush.xpose.msra.mxu0 0.0
    %132 = vmatpush.xpose.msra.mxu0 0.0
    %133 = vmatpush.xpose.msra.mxu0 0.0
    %134 = vmatpush.xpose.msra.mxu0 0.0
    %135 = vmatpush.xpose.msra.mxu0 0.0
    %136 = vmatpush.xpose.msra.mxu0 0.0
    %137 = vmatpush.xpose.msra.mxu0 0.0
    %138 = vmatpush.xpose.msra.mxu0 0.0
    %139 = vmatpush.xpose.msra.mxu0 0.0
    %140 = vmatpush.xpose.msra.mxu0 0.0
    %141 = vmatpush.xpose.msra.mxu0 %v124
    %142 = vmatmul.f32.gmra.mxu0 %v121
    %v143 = vpop.f32.mrf.mxu0
    %v144 = vadd.f32 0.0, %v143
    %145 = vdwg.mxu0
    %v147 = vsel %vm41, %v21, 0
    %v150 = vsel %vm41, %v29, 0
    %152 = vmatpush.xpose.msra.mxu0 0.0
    %153 = vmatpush.xpose.msra.mxu0 0.0
    %154 = vmatpush.xpose.msra.mxu0 0.0
    %155 = vmatpush.xpose.msra.mxu0 0.0
    %156 = vmatpush.xpose.msra.mxu0 0.0
    %157 = vmatpush.xpose.msra.mxu0 0.0
    %158 = vmatpush.xpose.msra.mxu0 0.0
    %159 = vmatpush.xpose.msra.mxu0 0.0
    %160 = vmatpush.xpose.msra.mxu0 0.0
    %161 = vmatpush.xpose.msra.mxu0 0.0
    %162 = vmatpush.xpose.msra.mxu0 0.0
    %163 = vmatpush.xpose.msra.mxu0 0.0
    %164 = vmatpush.xpose.msra.mxu0 0.0
    %165 = vmatpush.xpose.msra.mxu0 0.0
    %166 = vmatpush.xpose.msra.mxu0 0.0
    %167 = vmatpush.xpose.msra.mxu0 %v150
    %168 = vmatmul.f32.gmra.mxu0 %v147
    %v169 = vpop.f32.mrf.mxu0
    %v170 = vadd.f32 0.0, %v169
    %171 = vdwg.mxu0
    %v173 = vsel %vm41, %v22, 0
    %v176 = vsel %vm41, %v30, 0
    %178 = vmatpush.xpose.msra.mxu0 0.0
    %179 = vmatpush.xpose.msra.mxu0 0.0
    %180 = vmatpush.xpose.msra.mxu0 0.0
    %181 = vmatpush.xpose.msra.mxu0 0.0
    %182 = vmatpush.xpose.msra.mxu0 0.0
    %183 = vmatpush.xpose.msra.mxu0 0.0
    %184 = vmatpush.xpose.msra.mxu0 0.0
    %185 = vmatpush.xpose.msra.mxu0 0.0
    %186 = vmatpush.xpose.msra.mxu0 0.0
    %187 = vmatpush.xpose.msra.mxu0 0.0
    %188 = vmatpush.xpose.msra.mxu0 0.0
    %189 = vmatpush.xpose.msra.mxu0 0.0
    %190 = vmatpush.xpose.msra.mxu0 0.0
    %191 = vmatpush.xpose.msra.mxu0 0.0
    %192 = vmatpush.xpose.msra.mxu0 0.0
    %193 = vmatpush.xpose.msra.mxu0 %v176
    %194 = vmatmul.f32.gmra.mxu0 %v173
    %v195 = vpop.f32.mrf.mxu0
    %v196 = vadd.f32 0.0, %v195
    %197 = vdwg.mxu0
    %v199 = vsel %vm41, %v23, 0
    %v202 = vsel %vm41, %v31, 0
    %204 = vmatpush.xpose.msra.mxu0 0.0
    %205 = vmatpush.xpose.msra.mxu0 0.0
    %206 = vmatpush.xpose.msra.mxu0 0.0
    %207 = vmatpush.xpose.msra.mxu0 0.0
    %208 = vmatpush.xpose.msra.mxu0 0.0
    %209 = vmatpush.xpose.msra.mxu0 0.0
    %210 = vmatpush.xpose.msra.mxu0 0.0
    %211 = vmatpush.xpose.msra.mxu0 0.0
    %212 = vmatpush.xpose.msra.mxu0 0.0
    %213 = vmatpush.xpose.msra.mxu0 0.0
    %214 = vmatpush.xpose.msra.mxu0 0.0
    %215 = vmatpush.xpose.msra.mxu0 0.0
    %216 = vmatpush.xpose.msra.mxu0 0.0
    %217 = vmatpush.xpose.msra.mxu0 0.0
    %218 = vmatpush.xpose.msra.mxu0 0.0
    %219 = vmatpush.xpose.msra.mxu0 %v202
    %220 = vmatmul.f32.gmra.mxu0 %v199
    %v221 = vpop.f32.mrf.mxu0
    %v222 = vadd.f32 0.0, %v221
    %223 = vdwg.mxu0
    %v225 = vsel %vm41, %v24, 0
    %v228 = vsel %vm41, %v32, 0
    %230 = vmatpush.xpose.msra.mxu0 0.0
    %231 = vmatpush.xpose.msra.mxu0 0.0
    %232 = vmatpush.xpose.msra.mxu0 0.0
    %233 = vmatpush.xpose.msra.mxu0 0.0
    %234 = vmatpush.xpose.msra.mxu0 0.0
    %235 = vmatpush.xpose.msra.mxu0 0.0
    %236 = vmatpush.xpose.msra.mxu0 0.0
    %237 = vmatpush.xpose.msra.mxu0 0.0
    %238 = vmatpush.xpose.msra.mxu0 0.0
    %239 = vmatpush.xpose.msra.mxu0 0.0
    %240 = vmatpush.xpose.msra.mxu0 0.0
    %241 = vmatpush.xpose.msra.mxu0 0.0
    %242 = vmatpush.xpose.msra.mxu0 0.0
    %243 = vmatpush.xpose.msra.mxu0 0.0
    %244 = vmatpush.xpose.msra.mxu0 0.0
    %245 = vmatpush.xpose.msra.mxu0 %v228
    %246 = vmatmul.f32.gmra.mxu0 %v225
    %v247 = vpop.f32.mrf.mxu0
    %v248 = vadd.f32 0.0, %v247
    %249 = vdwg.mxu0
    %v250 = vmul.f32 %v66, 0.37796447
    %v251 = vmul.f32 %v92, 0.37796447
    %v252 = vmul.f32 %v118, 0.37796447
    %v253 = vmul.f32 %v144, 0.37796447
    %v254 = vmul.f32 %v170, 0.37796447
    %v255 = vmul.f32 %v196, 0.37796447
    %v256 = vmul.f32 %v222, 0.37796447
    %v257 = vmul.f32 %v248, 0.37796447
    %v258 = vsel %vm41, %v250, -inf
    %259 = vmax.xlane.f32.xlu0 %v258
    %v260 = vpop.xlane.xlu0 %259
    %v261 = vsel %vm41, %v251, -inf
    %262 = vmax.xlane.f32.xlu0 %v261
    %v263 = vpop.xlane.xlu0 %262
    %v264 = vsel %vm41, %v252, -inf
    %265 = vmax.xlane.f32.xlu0 %v264
    %v266 = vpop.xlane.xlu0 %265
    %v267 = vsel %vm41, %v253, -inf
    %268 = vmax.xlane.f32.xlu0 %v267
    %v269 = vpop.xlane.xlu0 %268
    %v270 = vsel %vm41, %v254, -inf
    %271 = vmax.xlane.f32.xlu0 %v270
    %v272 = vpop.xlane.xlu0 %271
    %v273 = vsel %vm41, %v255, -inf
    %274 = vmax.xlane.f32.xlu0 %v273
    %v275 = vpop.xlane.xlu0 %274
    %v276 = vsel %vm41, %v256, -inf
    %277 = vmax.xlane.f32.xlu0 %v276
    %v278 = vpop.xlane.xlu0 %277
    %v279 = vsel %vm41, %v257, -inf
    %280 = vmax.xlane.f32.xlu0 %v279
    %v281 = vpop.xlane.xlu0 %280
    %v282 = vsub.f32 %v250, %v260
    %v283 = vsub.f32 %v251, %v263
    %v284 = vsub.f32 %v252, %v266
    %v285 = vsub.f32 %v253, %v269
    %v286 = vsub.f32 %v254, %v272
    %v287 = vsub.f32 %v255, %v275
    %v288 = vsub.f32 %v256, %v278
    %v289 = vsub.f32 %v257, %v281
    %v290 = vmul.f32 %v282, 1.442695
    %v291 = vpow.pop %v290
    %v292 = vmul.f32 %v283, 1.442695
    %v293 = vpow.pop %v292
    %v294 = vmul.f32 %v284, 1.442695
    %v295 = vpow.pop %v294
    %v296 = vmul.f32 %v285, 1.442695
    %v297 = vpow.pop %v296
    %v298 = vmul.f32 %v286, 1.442695
    %v299 = vpow.pop %v298
    %v300 = vmul.f32 %v287, 1.442695
    %v301 = vpow.pop %v300
    %v302 = vmul.f32 %v288, 1.442695
    %v303 = vpow.pop %v302
    %v304 = vmul.f32 %v289, 1.442695
    %v305 = vpow.pop %v304
    %v306 = vsel %vm41, %v291, 0.0
    %307 = vadd.xlane.f32.xlu0 %v306
    %v308 = vpop.xlane.xlu0 %307
    %v309 = vsel %vm41, %v293, 0.0
    %310 = vadd.xlane.f32.xlu0 %v309
    %v311 = vpop.xlane.xlu0 %310
    %v312 = vsel %vm41, %v295, 0.0
    %313 = vadd.xlane.f32.xlu0 %v312
    %v314 = vpop.xlane.xlu0 %313
    %v315 = vsel %vm41, %v297, 0.0
    %316 = vadd.xlane.f32.xlu0 %v315
    %v317 = vpop.xlane.xlu0 %316
    %v318 = vsel %vm41, %v299, 0.0
    %319 = vadd.xlane.f32.xlu0 %v318
    %v320 = vpop.xlane.xlu0 %319
    %v321 = vsel %vm41, %v301, 0.0
    %322 = vadd.xlane.f32.xlu0 %v321
    %v323 = vpop.xlane.xlu0 %322
    %v324 = vsel %vm41, %v303, 0.0
    %325 = vadd.xlane.f32.xlu0 %v324
    %v326 = vpop.xlane.xlu0 %325
    %v327 = vsel %vm41, %v305, 0.0
    %328 = vadd.xlane.f32.xlu0 %v327
    %v329 = vpop.xlane.xlu0 %328
    %v330 = vrcp.pop %v308
    %v331 = vmul.f32 %v308, %v330
    %v332 = vsub.f32 1.0, %v331
    %v333 = vmul.f32 %v330, %v332
    %v334 = vadd.f32 %v330, %v333
    %vm335 = vweird.f32 %v308
    %vm336 = vweird.f32 %v330
    %vm337 = vmor %vm335, %vm336
    %v338 = vsel %vm337, %v330, %v334
    %v339 = vand.u32 2147483647, %v308
    %vm340 = vcmp.eq.f32.partialorder %v339, 8.507059e+37
    %v341 = vand.u32 %v308, 2147483648
    %v342 = vor.u32 1.1754944e-38, %v341
    %v343 = vsel %vm340, %v342, %v338
    %v344 = vmul.f32 %v291, %v343
    %v345 = vrcp.pop %v311
    %v346 = vmul.f32 %v311, %v345
    %v347 = vsub.f32 1.0, %v346
    %v348 = vmul.f32 %v345, %v347
    %v349 = vadd.f32 %v345, %v348
    %vm350 = vweird.f32 %v311
    %vm351 = vweird.f32 %v345
    %vm352 = vmor %vm350, %vm351
    %v353 = vsel %vm352, %v345, %v349
    %v354 = vand.u32 2147483647, %v311
    %vm355 = vcmp.eq.f32.partialorder %v354, 8.507059e+37
    %v356 = vand.u32 %v311, 2147483648
    %v357 = vor.u32 1.1754944e-38, %v356
    %v358 = vsel %vm355, %v357, %v353
    %v359 = vmul.f32 %v293, %v358
    %v360 = vrcp.pop %v314
    %v361 = vmul.f32 %v314, %v360
    %v362 = vsub.f32 1.0, %v361
    %v363 = vmul.f32 %v360, %v362
    %v364 = vadd.f32 %v360, %v363
    %vm365 = vweird.f32 %v314
    %vm366 = vweird.f32 %v360
    %vm367 = vmor %vm365, %vm366
    %v368 = vsel %vm367, %v360, %v364
    %v369 = vand.u32 2147483647, %v314
    %vm370 = vcmp.eq.f32.partialorder %v369, 8.507059e+37
    %v371 = vand.u32 %v314, 2147483648
    %v372 = vor.u32 1.1754944e-38, %v371
    %v373 = vsel %vm370, %v372, %v368
    %v374 = vmul.f32 %v295, %v373
    %v375 = vrcp.pop %v317
    %v376 = vmul.f32 %v317, %v375
    %v377 = vsub.f32 1.0, %v376
    %v378 = vmul.f32 %v375, %v377
    %v379 = vadd.f32 %v375, %v378
    %vm380 = vweird.f32 %v317
    %vm381 = vweird.f32 %v375
    %vm382 = vmor %vm380, %vm381
    %v383 = vsel %vm382, %v375, %v379
    %v384 = vand.u32 2147483647, %v317
    %vm385 = vcmp.eq.f32.partialorder %v384, 8.507059e+37
    %v386 = vand.u32 %v317, 2147483648
    %v387 = vor.u32 1.1754944e-38, %v386
    %v388 = vsel %vm385, %v387, %v383
    %v389 = vmul.f32 %v297, %v388
    %v390 = vrcp.pop %v320
    %v391 = vmul.f32 %v320, %v390
    %v392 = vsub.f32 1.0, %v391
    %v393 = vmul.f32 %v390, %v392
    %v394 = vadd.f32 %v390, %v393
    %vm395 = vweird.f32 %v320
    %vm396 = vweird.f32 %v390
    %vm397 = vmor %vm395, %vm396
    %v398 = vsel %vm397, %v390, %v394
    %v399 = vand.u32 2147483647, %v320
    %vm400 = vcmp.eq.f32.partialorder %v399, 8.507059e+37
    %v401 = vand.u32 %v320, 2147483648
    %v402 = vor.u32 1.1754944e-38, %v401
    %v403 = vsel %vm400, %v402, %v398
    %v404 = vmul.f32 %v299, %v403
    %v405 = vrcp.pop %v323
    %v406 = vmul.f32 %v323, %v405
    %v407 = vsub.f32 1.0, %v406
    %v408 = vmul.f32 %v405, %v407
    %v409 = vadd.f32 %v405, %v408
    %vm410 = vweird.f32 %v323
    %vm411 = vweird.f32 %v405
    %vm412 = vmor %vm410, %vm411
    %v413 = vsel %vm412, %v405, %v409
    %v414 = vand.u32 2147483647, %v323
    %vm415 = vcmp.eq.f32.partialorder %v414, 8.507059e+37
    %v416 = vand.u32 %v323, 2147483648
    %v417 = vor.u32 1.1754944e-38, %v416
    %v418 = vsel %vm415, %v417, %v413
    %v419 = vmul.f32 %v301, %v418
    %v420 = vrcp.pop %v326
    %v421 = vmul.f32 %v326, %v420
    %v422 = vsub.f32 1.0, %v421
    %v423 = vmul.f32 %v420, %v422
    %v424 = vadd.f32 %v420, %v423
    %vm425 = vweird.f32 %v326
    %vm426 = vweird.f32 %v420
    %vm427 = vmor %vm425, %vm426
    %v428 = vsel %vm427, %v420, %v424
    %v429 = vand.u32 2147483647, %v326
    %vm430 = vcmp.eq.f32.partialorder %v429, 8.507059e+37
    %v431 = vand.u32 %v326, 2147483648
    %v432 = vor.u32 1.1754944e-38, %v431
    %v433 = vsel %vm430, %v432, %v428
    %v434 = vmul.f32 %v303, %v433
    %v435 = vrcp.pop %v329
    %v436 = vmul.f32 %v329, %v435
    %v437 = vsub.f32 1.0, %v436
    %v438 = vmul.f32 %v435, %v437
    %v439 = vadd.f32 %v435, %v438
    %vm440 = vweird.f32 %v329
    %vm441 = vweird.f32 %v435
    %vm442 = vmor %vm440, %vm441
    %v443 = vsel %vm442, %v435, %v439
    %v444 = vand.u32 2147483647, %v329
    %vm445 = vcmp.eq.f32.partialorder %v444, 8.507059e+37
    %v446 = vand.u32 %v329, 2147483648
    %v447 = vor.u32 1.1754944e-38, %v446
    %v448 = vsel %vm445, %v447, %v443
    %v449 = vmul.f32 %v305, %v448
    %450 = vst.msk [vmem:[#allocation2] sm:$0xff] %vm41, %v344
    %451 = vst.msk [vmem:[#allocation2 + $0x8] sm:$0xff] %vm41, %v359
    %452 = vst.msk [vmem:[#allocation2 + $0x10] sm:$0xff] %vm41, %v374
    %453 = vst.msk [vmem:[#allocation2 + $0x18] sm:$0xff] %vm41, %v389
    %454 = vst.msk [vmem:[#allocation2 + $0x20] sm:$0xff] %vm41, %v404
    %455 = vst.msk [vmem:[#allocation2 + $0x28] sm:$0xff] %vm41, %v419
    %456 = vst.msk [vmem:[#allocation2 + $0x30] sm:$0xff] %vm41, %v434
    %457 = vst.msk [vmem:[#allocation2 + $0x38] sm:$0xff] %vm41, %v449
    %v459 = vsel %vm41, %v344, 0
    %461 = vmatpush.msra.mxu0 0.0
    %462 = vmatpush.msra.mxu0 0.0
    %463 = vmatpush.msra.mxu0 0.0
    %464 = vmatpush.msra.mxu0 0.0
    %465 = vmatpush.msra.mxu0 0.0
    %466 = vmatpush.msra.mxu0 0.0
    %467 = vmatpush.msra.mxu0 0.0
    %468 = vmatpush.msra.mxu0 0.0
    %469 = vmatpush.msra.mxu0 0.0
    %470 = vmatpush.msra.mxu0 0.0
    %471 = vmatpush.msra.mxu0 0.0
    %472 = vmatpush.msra.mxu0 0.0
    %473 = vmatpush.msra.mxu0 0.0
    %474 = vmatpush.msra.mxu0 0.0
    %475 = vmatpush.msra.mxu0 0.0
    %476 = vmatpush.msra.mxu0 %v33
    %477 = vmatmul.f32.gmra.mxu0 %v459
    %v478 = vpop.f32.mrf.mxu0
    %v479 = vadd.f32 0.0, %v478
    %480 = vdwg.mxu0
    %v482 = vsel %vm41, %v359, 0
    %484 = vmatpush.msra.mxu0 0.0
    %485 = vmatpush.msra.mxu0 0.0
    %486 = vmatpush.msra.mxu0 0.0
    %487 = vmatpush.msra.mxu0 0.0
    %488 = vmatpush.msra.mxu0 0.0
    %489 = vmatpush.msra.mxu0 0.0
    %490 = vmatpush.msra.mxu0 0.0
    %491 = vmatpush.msra.mxu0 0.0
    %492 = vmatpush.msra.mxu0 0.0
    %493 = vmatpush.msra.mxu0 0.0
    %494 = vmatpush.msra.mxu0 0.0
    %495 = vmatpush.msra.mxu0 0.0
    %496 = vmatpush.msra.mxu0 0.0
    %497 = vmatpush.msra.mxu0 0.0
    %498 = vmatpush.msra.mxu0 0.0
    %499 = vmatpush.msra.mxu0 %v34
    %500 = vmatmul.f32.gmra.mxu0 %v482
    %v501 = vpop.f32.mrf.mxu0
    %v502 = vadd.f32 0.0, %v501
    %503 = vdwg.mxu0
    %v505 = vsel %vm41, %v374, 0
    %507 = vmatpush.msra.mxu0 0.0
    %508 = vmatpush.msra.mxu0 0.0
    %509 = vmatpush.msra.mxu0 0.0
    %510 = vmatpush.msra.mxu0 0.0
    %511 = vmatpush.msra.mxu0 0.0
    %512 = vmatpush.msra.mxu0 0.0
    %513 = vmatpush.msra.mxu0 0.0
    %514 = vmatpush.msra.mxu0 0.0
    %515 = vmatpush.msra.mxu0 0.0
    %516 = vmatpush.msra.mxu0 0.0
    %517 = vmatpush.msra.mxu0 0.0
    %518 = vmatpush.msra.mxu0 0.0
    %519 = vmatpush.msra.mxu0 0.0
    %520 = vmatpush.msra.mxu0 0.0
    %521 = vmatpush.msra.mxu0 0.0
    %522 = vmatpush.msra.mxu0 %v35
    %523 = vmatmul.f32.gmra.mxu0 %v505
    %v524 = vpop.f32.mrf.mxu0
    %v525 = vadd.f32 0.0, %v524
    %526 = vdwg.mxu0
    %v528 = vsel %vm41, %v389, 0
    %530 = vmatpush.msra.mxu0 0.0
    %531 = vmatpush.msra.mxu0 0.0
    %532 = vmatpush.msra.mxu0 0.0
    %533 = vmatpush.msra.mxu0 0.0
    %534 = vmatpush.msra.mxu0 0.0
    %535 = vmatpush.msra.mxu0 0.0
    %536 = vmatpush.msra.mxu0 0.0
    %537 = vmatpush.msra.mxu0 0.0
    %538 = vmatpush.msra.mxu0 0.0
    %539 = vmatpush.msra.mxu0 0.0
    %540 = vmatpush.msra.mxu0 0.0
    %541 = vmatpush.msra.mxu0 0.0
    %542 = vmatpush.msra.mxu0 0.0
    %543 = vmatpush.msra.mxu0 0.0
    %544 = vmatpush.msra.mxu0 0.0
    %545 = vmatpush.msra.mxu0 %v36
    %546 = vmatmul.f32.gmra.mxu0 %v528
    %v547 = vpop.f32.mrf.mxu0
    %v548 = vadd.f32 0.0, %v547
    %549 = vdwg.mxu0
    %v551 = vsel %vm41, %v404, 0
    %553 = vmatpush.msra.mxu0 0.0
    %554 = vmatpush.msra.mxu0 0.0
    %555 = vmatpush.msra.mxu0 0.0
    %556 = vmatpush.msra.mxu0 0.0
    %557 = vmatpush.msra.mxu0 0.0
    %558 = vmatpush.msra.mxu0 0.0
    %559 = vmatpush.msra.mxu0 0.0
    %560 = vmatpush.msra.mxu0 0.0
    %561 = vmatpush.msra.mxu0 0.0
    %562 = vmatpush.msra.mxu0 0.0
    %563 = vmatpush.msra.mxu0 0.0
    %564 = vmatpush.msra.mxu0 0.0
    %565 = vmatpush.msra.mxu0 0.0
    %566 = vmatpush.msra.mxu0 0.0
    %567 = vmatpush.msra.mxu0 0.0
    %568 = vmatpush.msra.mxu0 %v37
    %569 = vmatmul.f32.gmra.mxu0 %v551
    %v570 = vpop.f32.mrf.mxu0
    %v571 = vadd.f32 0.0, %v570
    %572 = vdwg.mxu0
    %v574 = vsel %vm41, %v419, 0
    %576 = vmatpush.msra.mxu0 0.0
    %577 = vmatpush.msra.mxu0 0.0
    %578 = vmatpush.msra.mxu0 0.0
    %579 = vmatpush.msra.mxu0 0.0
    %580 = vmatpush.msra.mxu0 0.0
    %581 = vmatpush.msra.mxu0 0.0
    %582 = vmatpush.msra.mxu0 0.0
    %583 = vmatpush.msra.mxu0 0.0
    %584 = vmatpush.msra.mxu0 0.0
    %585 = vmatpush.msra.mxu0 0.0
    %586 = vmatpush.msra.mxu0 0.0
    %587 = vmatpush.msra.mxu0 0.0
    %588 = vmatpush.msra.mxu0 0.0
    %589 = vmatpush.msra.mxu0 0.0
    %590 = vmatpush.msra.mxu0 0.0
    %591 = vmatpush.msra.mxu0 %v38
    %592 = vmatmul.f32.gmra.mxu0 %v574
    %v593 = vpop.f32.mrf.mxu0
    %v594 = vadd.f32 0.0, %v593
    %595 = vdwg.mxu0
    %v597 = vsel %vm41, %v434, 0
    %599 = vmatpush.msra.mxu0 0.0
    %600 = vmatpush.msra.mxu0 0.0
    %601 = vmatpush.msra.mxu0 0.0
    %602 = vmatpush.msra.mxu0 0.0
    %603 = vmatpush.msra.mxu0 0.0
    %604 = vmatpush.msra.mxu0 0.0
    %605 = vmatpush.msra.mxu0 0.0
    %606 = vmatpush.msra.mxu0 0.0
    %607 = vmatpush.msra.mxu0 0.0
    %608 = vmatpush.msra.mxu0 0.0
    %609 = vmatpush.msra.mxu0 0.0
    %610 = vmatpush.msra.mxu0 0.0
    %611 = vmatpush.msra.mxu0 0.0
    %612 = vmatpush.msra.mxu0 0.0
    %613 = vmatpush.msra.mxu0 0.0
    %614 = vmatpush.msra.mxu0 %v39
    %615 = vmatmul.f32.gmra.mxu0 %v597
    %v616 = vpop.f32.mrf.mxu0
    %v617 = vadd.f32 0.0, %v616
    %618 = vdwg.mxu0
    %v620 = vsel %vm41, %v449, 0
    %622 = vmatpush.msra.mxu0 0.0
    %623 = vmatpush.msra.mxu0 0.0
    %624 = vmatpush.msra.mxu0 0.0
    %625 = vmatpush.msra.mxu0 0.0
    %626 = vmatpush.msra.mxu0 0.0
    %627 = vmatpush.msra.mxu0 0.0
    %628 = vmatpush.msra.mxu0 0.0
    %629 = vmatpush.msra.mxu0 0.0
    %630 = vmatpush.msra.mxu0 0.0
    %631 = vmatpush.msra.mxu0 0.0
    %632 = vmatpush.msra.mxu0 0.0
    %633 = vmatpush.msra.mxu0 0.0
    %634 = vmatpush.msra.mxu0 0.0
    %635 = vmatpush.msra.mxu0 0.0
    %636 = vmatpush.msra.mxu0 0.0
    %637 = vmatpush.msra.mxu0 %v40
    %638 = vmatmul.f32.gmra.mxu0 %v620
    %v639 = vpop.f32.mrf.mxu0
    %v640 = vadd.f32 0.0, %v639
    %641 = vdwg.mxu0
    %642 = vst.msk [vmem:[%s3] sm:$0xff] %vm41, %v479
    %643 = vst.msk [vmem:[%s3 + $0x8] sm:$0xff] %vm41, %v502
    %644 = vst.msk [vmem:[%s3 + $0x10] sm:$0xff] %vm41, %v525
    %645 = vst.msk [vmem:[%s3 + $0x18] sm:$0xff] %vm41, %v548
    %646 = vst.msk [vmem:[%s3 + $0x20] sm:$0xff] %vm41, %v571
    %647 = vst.msk [vmem:[%s3 + $0x28] sm:$0xff] %vm41, %v594
    %648 = vst.msk [vmem:[%s3 + $0x30] sm:$0xff] %vm41, %v617
    %649 = vst.msk [vmem:[%s3 + $0x38] sm:$0xff] %vm41, %v640
    // Predicated region
    $region14: #{scaled_dot_product_attention.1} parent=1 // pred_check
      _
    $region15: #{scaled_dot_product_attention.1} parent=1 // pred_check_branch
      %651 = sbr.rel (0) target = $region17
    $region16: #{scaled_dot_product_attention.1} parent=1 // pred_region
      _
    $region17: #{scaled_dot_product_attention.1} parent=1 // pred_fallthru
      _
    // Predicated region
    $region18: #{scaled_dot_product_attention.1} parent=1 // pred_check
      _
    $region19: #{scaled_dot_product_attention.1} parent=1 // pred_check_branch
      %653 = sbr.rel (0) target = $region21
    $region20: #{scaled_dot_product_attention.1} parent=1 // pred_region
      %655 = vsyncadd [#allocation3], 0
      %s656 = sshll.u32 [#allocation2], 4
      %s657 = int_to_ptr.vmem [resolvable:$true] %s656
      %s658 = sshll.u32 %s4, 4
      %s659 = int_to_ptr.hbm [resolvable:$true] %s658
      %664 = dma.vmem_to_hbm [thread:$0]  %s657, 1024, %s659, [#allocation3], 128, 128, 8
    $region21: #{scaled_dot_product_attention.1} parent=1 // pred_fallthru
      _
    // Predicated region
    $region22: #{scaled_dot_product_attention.1} parent=1 // pred_check
      _
    $region23: #{scaled_dot_product_attention.1} parent=1 // pred_check_branch
      %666 = sbr.rel (0) target = $region25
    $region24: #{scaled_dot_product_attention.1} parent=1 // pred_region
      _
    $region25: #{scaled_dot_product_attention.1} parent=1 // pred_fallthru
      _
    // Predicated region
    $region26: #{scaled_dot_product_attention.1} parent=1 // pred_check
      _
    $region27: #{scaled_dot_product_attention.1} parent=1 // pred_check_branch
      %668 = sbr.rel (0) target = $region29
    $region28: #{scaled_dot_product_attention.1} parent=1 // pred_region
      %670 = dma.done [#allocation3], 1024
    $region29: #{scaled_dot_product_attention.1} parent=1 // pred_fallthru
      _
    %671 = vsyncpa [#allocation3], 1

</llo_original>
